<compile_context>
chip_gen: v7x
topology: tpu7x:2x2x1
jax: 0.10.0
libtpu: 0.0.40
codegen_flags: <defaults>
</compile_context>

<pallas_src>
import functools

import jax
import jax.numpy as jnp
from jax.experimental import pallas as pl
from jax.experimental.pallas import tpu as pltpu


def _round_up(x, m):
    return (x + m - 1) // m * m


# ----------------------------------------------------------------------------
# Pallas kernel: tiled GEMM with fused bias + activation epilogue.
# ----------------------------------------------------------------------------
def _mask_head_kernel(x_ref, w_ref, b_ref, o_ref, acc_ref, *, activation):
    # grid = (Mp//tm, Np//tn, Kp//tk); K (reduction) is the trailing "arbitrary" axis.
    #   x_ref:   (tm, tk)  input rows (flattened batch*time)
    #   w_ref:   (tk, tn)  W^T tile
    #   b_ref:   (1,  tn)  bias tile
    #   o_ref:   (tm, tn)  output tile (lane-dense)
    #   acc_ref: (tm, tn)  f32 VMEM accumulator, resident across the K axis.
    @pl.when(pl.program_id(2) == 0)
    def _init():
        acc_ref[...] = jnp.zeros_like(acc_ref)

    acc_ref[...] += jnp.dot(x_ref[...], w_ref[...],
                            preferred_element_type=jnp.float32)

    @pl.when(pl.program_id(2) == pl.num_programs(2) - 1)
    def _finish():
        o_ref[...] = activation(acc_ref[...] + b_ref[...]).astype(o_ref.dtype)


def _maybe_pad2d(a, rows, cols):
    r, c = a.shape
    if r == rows and c == cols:
        return a
    return jnp.pad(a, ((0, rows - r), (0, cols - c)))


# ----------------------------------------------------------------------------
# BaseMaskHead.forward
# ----------------------------------------------------------------------------
def mask_head_forward(x, weight, bias, *, freq_bins, n_channels, output_dim=1,
                      activation=lambda v: v, tm=256, tn=256, tk=512):
    """Mirrors BaseMaskHead.forward.

    x:      (B, T, input_dim)                               embedding (batch_first)
    weight: (freq_bins*n_channels*output_dim, input_dim)    torch Linear weight
    bias:   (freq_bins*n_channels*output_dim,)
    returns (B, n_channels, freq_bins, T)             if output_dim == 1
            (B, n_channels, freq_bins, T, output_dim) otherwise
    """
    B, T, K = x.shape
    N = freq_bins * n_channels * output_dim
    assert weight.shape == (N, K), (weight.shape, (N, K))
    assert bias.shape == (N,)

    M = B * T
    # Shrink tiles to the (padded) full extent for small problems so each grid axis
    # degenerates to 1; keep large pipelined tiles otherwise.
    tm = min(tm, _round_up(M, 8))
    tn = min(tn, _round_up(N, 128))
    tk = min(tk, _round_up(K, 128))

    Mp, Np, Kp = _round_up(M, tm), _round_up(N, tn), _round_up(K, tk)

    # Zero padding on K is exact for the matmul; padded M rows / N cols are sliced
    # off afterwards.  Padding is a no-op when shapes are already aligned.
    x_p = _maybe_pad2d(x.reshape(M, K), Mp, Kp)
    w_p = _maybe_pad2d(jnp.transpose(weight), Kp, Np)        # (Kp, Np)
    b_p = _maybe_pad2d(bias.reshape(1, N), 1, Np)            # (1, Np)

    grid = (Mp // tm, Np // tn, Kp // tk)

    out_p = pl.pallas_call(
        functools.partial(_mask_head_kernel, activation=activation),
        out_shape=jax.ShapeDtypeStruct((Mp, Np), x.dtype),
        grid_spec=pltpu.PrefetchScalarGridSpec(
            num_scalar_prefetch=0,
            grid=grid,
            in_specs=[
                pl.BlockSpec((tm, tk), lambda i, j, k: (i, k)),
                pl.BlockSpec((tk, tn), lambda i, j, k: (k, j)),
                pl.BlockSpec((1, tn), lambda i, j, k: (0, j)),
            ],
            out_specs=pl.BlockSpec((tm, tn), lambda i, j, k: (i, j)),
            scratch_shapes=[pltpu.VMEM((tm, tn), jnp.float32)],
        ),
        compiler_params=pltpu.CompilerParams(
            dimension_semantics=("parallel", "parallel", "arbitrary"),
            vmem_limit_bytes=64 * 1024 * 1024,
        ),
    )(x_p, w_p, b_p)

    out = out_p[:M, :N]                                      # (B*T, F*C*D)
    # reshape(B, T, F, C, D) -> permute(0, 3, 2, 1, 4)  (activation already fused)
    out = out.reshape(B, T, freq_bins, n_channels, output_dim)
    out = jnp.transpose(out, (0, 3, 2, 1, 4))                # (B, C, F, T, D)
    if output_dim == 1:
        out = out[..., 0]                                    # squeeze(-1)
    return out


def _ref_forward(x, weight, bias, freq_bins, n_channels, output_dim, activation):
    """Pure-JAX reference mirroring BaseMaskHead.forward."""
    B, T, K = x.shape
    y = x.reshape(B * T, K) @ weight.T + bias
    y = y.reshape(B, T, freq_bins, n_channels, output_dim)
    y = jnp.transpose(y, (0, 3, 2, 1, 4))
    y = activation(y)
    if output_dim == 1:
        y = y[..., 0]
    return y


if __name__ == "__main__":
    # Small shapes consistent with the module: x = BLSTM embedding (B, T, input_dim).
    B, T, D_IN = 2, 8, 64
    F_BINS, C, D_OUT = 16, 2, 1

    key = jax.random.PRNGKey(0)
    kx, kw, kb = jax.random.split(key, 3)
    x = jax.random.normal(kx, (B, T, D_IN), jnp.float32)
    w = jax.random.normal(kw, (F_BINS * C * D_OUT, D_IN), jnp.float32) * 0.05
    b = jax.random.normal(kb, (F_BINS * C * D_OUT,), jnp.float32) * 0.05

    # Default (identity) activation.
    out = mask_head_forward(x, w, b, freq_bins=F_BINS, n_channels=C,
                            output_dim=D_OUT)
    jax.block_until_ready(out)
    ref = _ref_forward(x, w, b, F_BINS, C, D_OUT, lambda v: v)
    assert out.shape == (B, C, F_BINS, T), out.shape
    assert bool(jnp.all(jnp.isfinite(out)))
    assert bool(jnp.allclose(out, ref, atol=1e-5, rtol=1e-5))

    # Fused non-trivial activation (e.g. sigmoid mask head).
    act = jax.nn.sigmoid
    out2 = mask_head_forward(x, w, b, freq_bins=F_BINS, n_channels=C,
                             output_dim=D_OUT, activation=act)
    jax.block_until_ready(out2)
    ref2 = _ref_forward(x, w, b, F_BINS, C, D_OUT, act)
    assert bool(jnp.allclose(out2, ref2, atol=1e-5, rtol=1e-5))

    print("KERNEL_OK")
</pallas_src>

<mosaic_0001>
module attributes {stable_mosaic.version = 11 : i64} {
  func.func @_mask_head_kernel(%arg0: i32, %arg1: i32, %arg2: i32, %arg3: memref<16x128xf32, #tpu.memory_space<vmem>>, %arg4: memref<128x128xf32, #tpu.memory_space<vmem>>, %arg5: memref<1x128xf32, #tpu.memory_space<vmem>>, %arg6: memref<16x128xf32, #tpu.memory_space<vmem>>, %arg7: memref<16x128xf32, #tpu.memory_space<vmem>>) attributes {dimension_semantics = [#tpu.dimension_semantics<parallel>, #tpu.dimension_semantics<parallel>, #tpu.dimension_semantics<arbitrary>], iteration_bounds = array<i64: 1, 1, 1>, scalar_prefetch = 0 : i64, scratch_operands = 1 : i64, tpu.core_type = #tpu.core_type<tc>, window_params = [{transform_indices = @transform_0, window_bounds = array<i64: 16, 128>}, {transform_indices = @transform_1, window_bounds = array<i64: 128, 128>}, {transform_indices = @transform_2, window_bounds = array<i64: 1, 128>}, {transform_indices = @transform_3, window_bounds = array<i64: 16, 128>}]} {
    %c0_i32 = arith.constant 0 : i32
    %0 = arith.cmpi eq, %arg2, %c0_i32 : i32
    %1 = arith.extui %0 : i1 to i32
    %c0_i32_0 = arith.constant 0 : i32
    %2 = arith.cmpi ne, %1, %c0_i32_0 : i32
    scf.if %2 {
      %cst_10 = arith.constant 0.000000e+00 : f32
      %12 = vector.broadcast %cst_10 : f32 to vector<16x128xf32>
      %c0_11 = arith.constant 0 : index
      %c0_12 = arith.constant 0 : index
      %13 = vector.load %arg7[%c0_11, %c0_12] : memref<16x128xf32, #tpu.memory_space<vmem>>, vector<16x128xf32>
      tpu.vector_store %arg7[%c0_11, %c0_12], %12 {strides = array<i32>} : memref<16x128xf32, #tpu.memory_space<vmem>>, vector<16x128xf32>,
    } else {
    }
    %c0 = arith.constant 0 : index
    %c0_1 = arith.constant 0 : index
    %3 = vector.load %arg7[%c0, %c0_1] : memref<16x128xf32, #tpu.memory_space<vmem>>, vector<16x128xf32>
    %c0_2 = arith.constant 0 : index
    %c0_3 = arith.constant 0 : index
    %4 = vector.load %arg3[%c0_2, %c0_3] : memref<16x128xf32, #tpu.memory_space<vmem>>, vector<16x128xf32>
    %c0_4 = arith.constant 0 : index
    %c0_5 = arith.constant 0 : index
    %5 = vector.load %arg4[%c0_4, %c0_5] : memref<128x128xf32, #tpu.memory_space<vmem>>, vector<128x128xf32>
    %cst = arith.constant dense<0.000000e+00> : vector<16x128xf32>
    %6 = tpu.matmul %4, %5, %cst {dimension_numbers = #tpu.dot_dimension_numbers<[1], [0], [0], [1], [0, 0, 1, 1], [], []>} : vector<16x128xf32>, vector<128x128xf32>, vector<16x128xf32> -> vector<16x128xf32>
    %7 = arith.addf %3, %6 : vector<16x128xf32>
    %c0_6 = arith.constant 0 : index
    %c0_7 = arith.constant 0 : index
    %8 = vector.load %arg7[%c0_6, %c0_7] : memref<16x128xf32, #tpu.memory_space<vmem>>, vector<16x128xf32>
    tpu.vector_store %arg7[%c0_6, %c0_7], %7 {strides = array<i32>} : memref<16x128xf32, #tpu.memory_space<vmem>>, vector<16x128xf32>,
    %c0_i32_8 = arith.constant 0 : i32
    %9 = arith.cmpi eq, %arg2, %c0_i32_8 : i32
    %10 = arith.extui %9 : i1 to i32
    %c0_i32_9 = arith.constant 0 : i32
    %11 = arith.cmpi ne, %10, %c0_i32_9 : i32
    scf.if %11 {
      %c0_10 = arith.constant 0 : index
      %c0_11 = arith.constant 0 : index
      %12 = vector.load %arg7[%c0_10, %c0_11] : memref<16x128xf32, #tpu.memory_space<vmem>>, vector<16x128xf32>
      %c0_12 = arith.constant 0 : index
      %c0_13 = arith.constant 0 : index
      %13 = vector.load %arg5[%c0_12, %c0_13] : memref<1x128xf32, #tpu.memory_space<vmem>>, vector<1x128xf32>
      %14 = vector.broadcast %13 : vector<1x128xf32> to vector<16x128xf32>
      %15 = arith.addf %12, %14 : vector<16x128xf32>
      %c0_14 = arith.constant 0 : index
      %c0_15 = arith.constant 0 : index
      %16 = vector.load %arg6[%c0_14, %c0_15] : memref<16x128xf32, #tpu.memory_space<vmem>>, vector<16x128xf32>
      tpu.vector_store %arg6[%c0_14, %c0_15], %15 {strides = array<i32>} : memref<16x128xf32, #tpu.memory_space<vmem>>, vector<16x128xf32>,
    } else {
    }
    return
  }
  func.func @transform_0(%arg0: i32, %arg1: i32, %arg2: i32) -> (i32, i32) {
    %c0_i32 = arith.constant 0 : i32
    return %arg0, %arg2 : i32, i32
  }
  func.func @transform_1(%arg0: i32, %arg1: i32, %arg2: i32) -> (i32, i32) {
    %c0_i32 = arith.constant 0 : i32
    return %arg2, %arg1 : i32, i32
  }
  func.func @transform_2(%arg0: i32, %arg1: i32, %arg2: i32) -> (i32, i32) {
    %c0_i32 = arith.constant 0 : i32
    %c0_i32_0 = arith.constant 0 : i32
    return %c0_i32, %arg1 : i32, i32
  }
  func.func @transform_3(%arg0: i32, %arg1: i32, %arg2: i32) -> (i32, i32) {
    %c0_i32 = arith.constant 0 : i32
    return %arg0, %arg1 : i32, i32
  }
}

</mosaic_0001>

<llo_original>
// kernel: tpu_custom_call.1
$region0: #{tpu_custom_call.1}
  #allocation0 [shape = 'u32[]', space=smem, size = 0x4, offset = 0x4, fixed_abs, tag = 'smem constant byte address 0x4 - core index']
  #allocation1 [shape = 'u32[144,128]{1,0:T(1,128)}', space=vmem, size = 0x12000, scoped, tag = 'internal scratch']
  #allocation2 [shape = 'f32[16,128]{1,0:T(8,128)}', space=vmem, size = 0x2000, scoped, tag = 'scratch operand']
  %s0 = inlined_call_operand.hbm [shape: f32[16,128], index: 0, kind: input, shape index: {}]
  %s1 = inlined_call_operand.hbm [shape: f32[128,128], index: 1, kind: input, shape index: {}]
  %s2 = inlined_call_operand.hbm [shape: f32[1,128], index: 2, kind: input, shape index: {}]
  %s3 = inlined_call_operand.hbm [shape: f32[16,128], index: 3, kind: output, shape index: {}]
  %s4 = sld [smem:[#allocation0]]
  $region42: #{tpu_custom_call.1} parent=0
    _
  %s6 = ssub.s32 1, %s4
  %s7 = scalar_select 0, %s6, %s4
  $region1: #{tpu_custom_call.1} parent=0
    #allocation3 [shape = 'u8[8192]{0}', space=vmem, size = 0x2000, scoped, tag = 'input window, operand 0, single buffered']
    #allocation4 [shape = 's32[1]{0}', space=sflag, size = 0x4, scoped, tag = 'scoped memory for tpu_custom_call.1']
    #allocation5 [shape = 's32[1]{0}', space=sflag, size = 0x4, scoped, tag = 'scoped memory for tpu_custom_call.1']
    #allocation6 [shape = 'u8[65536]{0}', space=vmem, size = 0x10000, scoped, tag = 'input window, operand 1, single buffered']
    #allocation7 [shape = 's32[1]{0}', space=sflag, size = 0x4, scoped, tag = 'scoped memory for tpu_custom_call.1']
    #allocation8 [shape = 'u8[512]{0}', space=vmem, size = 0x400, scoped, tag = 'input window, operand 2, single buffered']
    #allocation9 [shape = 'u8[8192]{0}', space=vmem, size = 0x2000, scoped, tag = 'output window, operand 0, single buffered']
    %8 = vsyncpa [#allocation4], 0
    %9 = vsyncpa [#allocation7], 0
    %10 = vsyncpa [#allocation5], 0
    // Predicated region
    $region2: #{tpu_custom_call.1} parent=1 // pred_check
      _
    $region3: #{tpu_custom_call.1} parent=1 // pred_check_branch
      %12 = sbr.rel (0) target = $region5
    $region4: #{tpu_custom_call.1} parent=1 // pred_region
      %s14 = ssub.s32 256, 256
      %15 = vsyncadd [#allocation4], %s14
      %s16 = sshll.u32 [#allocation3], 4
      %s17 = int_to_ptr.vmem [resolvable:$true] %s16
      %22 = dma.hbm_to_vmem [thread:$0]  %s0, 256, %s17, [#allocation4], 128, 128, 8
    $region5: #{tpu_custom_call.1} parent=1 // pred_fallthru
      _
    // Predicated region
    $region6: #{tpu_custom_call.1} parent=1 // pred_check
      _
    $region7: #{tpu_custom_call.1} parent=1 // pred_check_branch
      %24 = sbr.rel (0) target = $region9
    $region8: #{tpu_custom_call.1} parent=1 // pred_region
      %s26 = ssub.s32 2048, 2048
      %27 = vsyncadd [#allocation7], %s26
      %s28 = sshll.u32 [#allocation6], 4
      %s29 = int_to_ptr.vmem [resolvable:$true] %s28
      %34 = dma.hbm_to_vmem [thread:$0]  %s1, 2048, %s29, [#allocation7], 128, 128, 8
    $region9: #{tpu_custom_call.1} parent=1 // pred_fallthru
      _
    // Predicated region
    $region10: #{tpu_custom_call.1} parent=1 // pred_check
      _
    $region11: #{tpu_custom_call.1} parent=1 // pred_check_branch
      %36 = sbr.rel (0) target = $region13
    $region12: #{tpu_custom_call.1} parent=1 // pred_region
      %s38 = ssub.s32 16, 16
      %39 = vsyncadd [#allocation7], %s38
      %s41 = sshll.u32 [#allocation8], 4
      %s42 = int_to_ptr.vmem [resolvable:$true] %s41
      %44 = dma.hbm_to_vmem [thread:$0]  %s2, 16, %s42, [#allocation7]
    $region13: #{tpu_custom_call.1} parent=1 // pred_fallthru
      _
    // Predicated region
    $region14: #{tpu_custom_call.1} parent=1 // pred_check
      _
    $region15: #{tpu_custom_call.1} parent=1 // pred_check_branch
      %46 = sbr.rel (0) target = $region17
    $region16: #{tpu_custom_call.1} parent=1 // pred_region
      %47 = dma.done [#allocation4], 256
    $region17: #{tpu_custom_call.1} parent=1 // pred_fallthru
      _
    // Predicated region
    $region18: #{tpu_custom_call.1} parent=1 // pred_check
      _
    $region19: #{tpu_custom_call.1} parent=1 // pred_check_branch
      %49 = sbr.rel (0) target = $region21
    $region20: #{tpu_custom_call.1} parent=1 // pred_region
      %50 = dma.done [#allocation7], 2048
    $region21: #{tpu_custom_call.1} parent=1 // pred_fallthru
      _
    // Predicated region
    $region22: #{tpu_custom_call.1} parent=1 // pred_check
      _
    $region23: #{tpu_custom_call.1} parent=1 // pred_check_branch
      %52 = sbr.rel (0) target = $region25
    $region24: #{tpu_custom_call.1} parent=1 // pred_region
      %53 = dma.done [#allocation7], 16
    $region25: #{tpu_custom_call.1} parent=1 // pred_fallthru
      _
    %p54 = scmp.eq.s32.totalorder 0, 0
    // Predicated region
    $region26: #{tpu_custom_call.1} parent=1 // pred_check
      %p55 = pneg %p54
    $region27: #{tpu_custom_call.1} parent=1 // pred_check_branch
      %57 = sbr.rel (%p55) target = $region29
    $region28: #{tpu_custom_call.1} parent=1 // pred_region
      %58 = vst [vmem:[#allocation2] sm:$0xff] 0.0
      %59 = vst [vmem:[#allocation2 + $0x8] sm:$0xff] 0.0
    $region29: #{tpu_custom_call.1} parent=1 // pred_fallthru
      _
    %v60 = vld [vmem:[#allocation2] sm:$0xff]
    %v61 = vld [vmem:[#allocation2 + $0x8] sm:$0xff]
    %v62 = vld [vmem:[#allocation3] sm:$0xff]
    %v63 = vld [vmem:[#allocation3 + $0x8] sm:$0xff]
    %v64 = vld [vmem:[#allocation6] sm:$0xff]
    %v65 = vld [vmem:[#allocation6 + $0x8] sm:$0xff]
    %v66 = vld [vmem:[#allocation6 + $0x10] sm:$0xff]
    %v67 = vld [vmem:[#allocation6 + $0x18] sm:$0xff]
    %v68 = vld [vmem:[#allocation6 + $0x20] sm:$0xff]
    %v69 = vld [vmem:[#allocation6 + $0x28] sm:$0xff]
    %v70 = vld [vmem:[#allocation6 + $0x30] sm:$0xff]
    %v71 = vld [vmem:[#allocation6 + $0x38] sm:$0xff]
    %v72 = vld [vmem:[#allocation6 + $0x40] sm:$0xff]
    %v73 = vld [vmem:[#allocation6 + $0x48] sm:$0xff]
    %v74 = vld [vmem:[#allocation6 + $0x50] sm:$0xff]
    %v75 = vld [vmem:[#allocation6 + $0x58] sm:$0xff]
    %v76 = vld [vmem:[#allocation6 + $0x60] sm:$0xff]
    %v77 = vld [vmem:[#allocation6 + $0x68] sm:$0xff]
    %v78 = vld [vmem:[#allocation6 + $0x70] sm:$0xff]
    %v79 = vld [vmem:[#allocation6 + $0x78] sm:$0xff]
    %80 = vmatprep.subr.mxu0 0.0
    %81 = vmatpush1.msra.mxu0 %v64
    %82 = vmatprep.subr.mxu0 0.0
    %83 = vmatpush1.msra.mxu0 %v65
    %84 = vmatprep.subr.mxu0 0.0
    %85 = vmatpush1.msra.mxu0 %v66
    %86 = vmatprep.subr.mxu0 0.0
    %87 = vmatpush1.msra.mxu0 %v67
    %88 = vmatprep.subr.mxu0 0.0
    %89 = vmatpush1.msra.mxu0 %v68
    %90 = vmatprep.subr.mxu0 0.0
    %91 = vmatpush1.msra.mxu0 %v69
    %92 = vmatprep.subr.mxu0 0.0
    %93 = vmatpush1.msra.mxu0 %v70
    %94 = vmatprep.subr.mxu0 0.0
    %95 = vmatpush1.msra.mxu0 %v71
    %96 = vmatprep.subr.mxu0 0.0
    %97 = vmatpush1.msra.mxu0 %v72
    %98 = vmatprep.subr.mxu0 0.0
    %99 = vmatpush1.msra.mxu0 %v73
    %100 = vmatprep.subr.mxu0 0.0
    %101 = vmatpush1.msra.mxu0 %v74
    %102 = vmatprep.subr.mxu0 0.0
    %103 = vmatpush1.msra.mxu0 %v75
    %104 = vmatprep.subr.mxu0 0.0
    %105 = vmatpush1.msra.mxu0 %v76
    %106 = vmatprep.subr.mxu0 0.0
    %107 = vmatpush1.msra.mxu0 %v77
    %108 = vmatprep.subr.mxu0 0.0
    %109 = vmatpush1.msra.mxu0 %v78
    %110 = vmatprep.subr.mxu0 0.0
    %111 = vmatpush1.msra.mxu0 %v79
    %112 = vmatprep.subr.mxu0 0.0
    %113 = vmatpush1.msra.mxu0 0.0
    %114 = vmatprep.subr.mxu0 0.0
    %115 = vmatpush1.msra.mxu0 0.0
    %116 = vmatprep.subr.mxu0 0.0
    %117 = vmatpush1.msra.mxu0 0.0
    %118 = vmatprep.subr.mxu0 0.0
    %119 = vmatpush1.msra.mxu0 0.0
    %120 = vmatprep.subr.mxu0 0.0
    %121 = vmatpush1.msra.mxu0 0.0
    %122 = vmatprep.subr.mxu0 0.0
    %123 = vmatpush1.msra.mxu0 0.0
    %124 = vmatprep.subr.mxu0 0.0
    %125 = vmatpush1.msra.mxu0 0.0
    %126 = vmatprep.subr.mxu0 0.0
    %127 = vmatpush1.msra.mxu0 0.0
    %128 = vmatprep.subr.mxu0 0.0
    %129 = vmatpush1.msra.mxu0 0.0
    %130 = vmatprep.subr.mxu0 0.0
    %131 = vmatpush1.msra.mxu0 0.0
    %132 = vmatprep.subr.mxu0 0.0
    %133 = vmatpush1.msra.mxu0 0.0
    %134 = vmatprep.subr.mxu0 0.0
    %135 = vmatpush1.msra.mxu0 0.0
    %136 = vmatprep.subr.mxu0 0.0
    %137 = vmatpush1.msra.mxu0 0.0
    %138 = vmatprep.subr.mxu0 0.0
    %139 = vmatpush1.msra.mxu0 0.0
    %140 = vmatprep.subr.mxu0 0.0
    %141 = vmatpush1.msra.mxu0 0.0
    %142 = vmatprep.subr.mxu0 0.0
    %143 = vmatpush1.msra.mxu0 0.0
    %144 = vmatprep.mubr.f32.mxu0 0.0
    %145 = vmatmul.mubr.f32.gmra.mrb[0].mxu0 %v62
    %v146 = vpop.f32.mrb[0].mxu0
    %v147 = vadd.f32 0.0, %v146
    %v148 = vpop.f32.mrb[0].mxu0
    %149 = vmatprep.mubr.f32.mxu0 0.0
    %150 = vmatmul.mubr.f32.gmra.mrb[0].mxu0 %v63
    %v151 = vpop.f32.mrb[0].mxu0
    %v152 = vadd.f32 0.0, %v151
    %v153 = vpop.f32.mrb[0].mxu0
    %154 = vdwg.mxu0
    %v155 = vadd.f32 %v60, %v147
    %v156 = vadd.f32 %v61, %v152
    %157 = vst [vmem:[#allocation2] sm:$0xff] %v155
    %158 = vst [vmem:[#allocation2 + $0x8] sm:$0xff] %v156
    // Predicated region
    $region30: #{tpu_custom_call.1} parent=1 // pred_check
      %p159 = pneg %p54
    $region31: #{tpu_custom_call.1} parent=1 // pred_check_branch
      %161 = sbr.rel (%p159) target = $region33
    $region32: #{tpu_custom_call.1} parent=1 // pred_region
      %v162 = vld [vmem:[#allocation2] sm:$0xff]
      %v163 = vld [vmem:[#allocation2 + $0x8] sm:$0xff]
      %v164 = vld [vmem:[#allocation8] sm:$0x1]
      %v166 = vlaneseq
      %v167 = vshrl.u32 %v166, 7
      %v168 = vsub.s32 0, %v167
      %v169 = vrot.slane %v164, %v168
      %v171 = vadd.f32 %v162, %v169
      %v172 = vadd.f32 %v163, %v169
      %173 = vst [vmem:[#allocation9] sm:$0xff] %v171
      %174 = vst [vmem:[#allocation9 + $0x8] sm:$0xff] %v172
    $region33: #{tpu_custom_call.1} parent=1 // pred_fallthru
      _
    // Predicated region
    $region34: #{tpu_custom_call.1} parent=1 // pred_check
      _
    $region35: #{tpu_custom_call.1} parent=1 // pred_check_branch
      %176 = sbr.rel (0) target = $region37
    $region36: #{tpu_custom_call.1} parent=1 // pred_region
      %s178 = ssub.s32 256, 256
      %179 = vsyncadd [#allocation5], %s178
      %s180 = sshll.u32 [#allocation9], 4
      %s181 = int_to_ptr.vmem [resolvable:$true] %s180
      %186 = dma.vmem_to_hbm [thread:$0]  %s181, 256, %s3, [#allocation5], 128, 128, 8
    $region37: #{tpu_custom_call.1} parent=1 // pred_fallthru
      _
    // Predicated region
    $region38: #{tpu_custom_call.1} parent=1 // pred_check
      _
    $region39: #{tpu_custom_call.1} parent=1 // pred_check_branch
      %188 = sbr.rel (0) target = $region41
    $region40: #{tpu_custom_call.1} parent=1 // pred_region
      %189 = dma.done [#allocation5], 256
    $region41: #{tpu_custom_call.1} parent=1 // pred_fallthru
      _
    %190 = vsyncpa [#allocation4], 1
    %191 = vsyncpa [#allocation7], 1
    %192 = vsyncpa [#allocation5], 1

</llo_original>
